<compile_context>
chip_gen: v7x
topology: tpu7x:2x2x1
jax: 0.10.0
libtpu: 0.0.40
codegen_flags: <defaults>
</compile_context>

<pallas_src>
import functools

import jax
import jax.numpy as jnp
from jax.experimental import pallas as pl
from jax.experimental.pallas import tpu as pltpu


def _ls_ce_kernel(x_ref, t_ref, out_ref, m_ref, s_ref, rs_ref, xt_ref, acc_ref, *,
                  block_n, block_c, row_steps, n_rows, n_classes, mask_cols):
    """Grid = (P row chunks, row tiles, class chunks).

    Per row tile, an online logsumexp over class chunks accumulates in f32 scratch:
      m_ref  : running row max
      s_ref  : running sum exp(x - m)
      rs_ref : running raw row sum (f32 accumulation)
      xt_ref : running x[i, target[i]]
    acc_ref (8,128) holds the per-row-chunk partial sums:
      acc[0,0] += sum_i ( C*lse_i - sum_j x_ij )      (smoothing term)
      acc[0,1] += sum_i ( lse_i - x_{i,target_i} )    (nll term)
    """
    p = pl.program_id(0)
    r = pl.program_id(1)
    c = pl.program_id(2)
    nc = pl.num_programs(2)

    # Zero the per-row-chunk global accumulator at the first step of this p chunk.
    @pl.when(jnp.logical_and(r == 0, c == 0))
    def _():
        acc_ref[...] = jnp.zeros_like(acc_ref)

    # Reset the per-row-tile online-softmax state at the first class chunk.
    @pl.when(c == 0)
    def _():
        m_ref[...] = jnp.full_like(m_ref, -jnp.inf)
        s_ref[...] = jnp.zeros_like(s_ref)
        rs_ref[...] = jnp.zeros_like(rs_ref)
        xt_ref[...] = jnp.zeros_like(xt_ref)

    x = x_ref[...]                                    # (block_n, block_c), native dtype
    col = jax.lax.broadcasted_iota(jnp.int32, x.shape, 1) + c * block_c
    if mask_cols:                                     # class-axis ragged tail
        colv = col < n_classes
        x_max_in = jnp.where(colv, x, -jnp.inf)
        x_sum_in = jnp.where(colv, x, 0.0)
    else:
        x_max_in = x
        x_sum_in = x

    # Online logsumexp update (running stats kept in f32; max/subtract in native dtype).
    m_prev = m_ref[...]
    m_new = jnp.maximum(
        m_prev, jnp.max(x_max_in, axis=-1, keepdims=True).astype(jnp.float32))
    alpha = jnp.exp(m_prev - m_new)                   # == 0 at c == 0 (m_prev = -inf)
    xm = x_max_in - m_new.astype(x.dtype)             # bf16 VALU subtract on v6e/v7x
    s_ref[...] = s_ref[...] * alpha + jnp.sum(
        jnp.exp(xm.astype(jnp.float32)), axis=-1, keepdims=True)
    m_ref[...] = m_new

    # Raw row sum (f32 accumulation) for the smoothing term.
    rs_ref[...] = rs_ref[...] + jnp.sum(x_sum_in, axis=-1, keepdims=True,
                                        dtype=jnp.float32)

    # Gather x[i, target[i]] via a lane-mask select (target hits exactly one chunk).
    tgt = t_ref[...]                                  # (block_n, 1) int32
    xt_ref[...] = xt_ref[...] + jnp.sum(jnp.where(col == tgt, x, 0.0),
                                        axis=-1, keepdims=True, dtype=jnp.float32)

    # Finalize this row tile after the last class chunk.
    @pl.when(c == nc - 1)
    def _():
        # Row-validity mask handles the ragged N tail and clamped duplicate tiles.
        row0 = (p * row_steps + r) * block_n
        rows = jax.lax.broadcasted_iota(jnp.int32, (block_n, 1), 0) + row0
        valid = rows < n_rows
        m_f = m_ref[...]
        log_s = jnp.log(s_ref[...])
        # -sum_j log_softmax(x)_ij = C*lse_i - sum_j x_ij
        smooth = jnp.where(valid,
                           jnp.float32(n_classes) * (m_f + log_s) - rs_ref[...], 0.0)
        # nll_i = lse_i - x_{i,target_i}, grouped as log(s) + (m - x_tgt)
        nll = jnp.where(valid, log_s + (m_f - xt_ref[...]), 0.0)
        sub = jax.lax.broadcasted_iota(jnp.int32, acc_ref.shape, 0)
        lane = jax.lax.broadcasted_iota(jnp.int32, acc_ref.shape, 1)
        acc_ref[...] = (acc_ref[...]
                        + jnp.where(jnp.logical_and(sub == 0, lane == 0),
                                    jnp.sum(smooth), 0.0)
                        + jnp.where(jnp.logical_and(sub == 0, lane == 1),
                                    jnp.sum(nll), 0.0))

    # Commit the per-chunk partial sums to the output block once per row chunk.
    @pl.when(jnp.logical_and(r == pl.num_programs(1) - 1, c == nc - 1))
    def _():
        out_ref[...] = acc_ref[...][None]


def _vmem_budget_bytes():
    """Physical VMEM (per TC) if queryable, else a v7x-safe fallback."""
    try:
        info = pltpu.get_tpu_info()
        cap = int(getattr(info, "vmem_capacity_bytes", 0))
        if cap > 0:
            return cap
    except Exception:
        pass
    return 64 * 1024 * 1024   # v7x per-TC physical VMEM; safe lower bound everywhere


def _default_num_parallel(num_row_tiles):
    """2 row chunks (one per TensorCore) only on two-TC chips (v7x); 1 on v5e/v6e."""
    if num_row_tiles < 2:
        return 1
    try:
        kind = jax.devices()[0].device_kind.lower()
    except Exception:
        return 1
    return 2 if ("v7" in kind or "7x" in kind) else 1


def _auto_tiles(N, C, itemsize, vmem_limit):
    # Class-axis chunk: full C when it fits in <= 2048 lanes (single fused pass),
    # otherwise lane-aligned chunks balanced over ceil(C / 2048) pieces.
    if C <= 2048:
        block_c = C
    else:
        n_chunks = pl.cdiv(C, 2048)
        block_c = min(2048, pl.cdiv(pl.cdiv(C, n_chunks), 128) * 128)
    # Row tile sizing budgets 2 double-buffered input copies plus ~5 f32-sized
    # in-kernel temporaries per row, and is capped at 512 rows (>=85% of roofline).
    row_align = 8 if itemsize >= 4 else (16 if itemsize == 2 else 32)
    per_row = block_c * (2 * itemsize + 5 * 4)
    block_n = (vmem_limit // 2) // per_row
    block_n = max(row_align, min(512, (block_n // row_align) * row_align))
    block_n = min(block_n, max(row_align, pl.cdiv(N, row_align) * row_align))
    return block_n, block_c


def label_smoothing_cross_entropy(logits, target, eps=0.1, reduction="mean",
                                  block_n=None, block_c=None, num_parallel=None):
    """Pallas TPU implementation of LabelSmoothingCrossEntropy.forward.

    logits: (N, C) float (f32 or bf16); target: (N,) int class indices.
    Returns a scalar float32.
    """
    N, C = logits.shape
    assert reduction in ("mean", "sum")
    # TODO(synk): reduction='none' (per-element losses) and ignore_index not implemented.
    # TODO(synk): out-of-range target indices silently contribute x_tgt = 0 (PyTorch raises).

    itemsize = jnp.dtype(logits.dtype).itemsize
    phys_vmem = _vmem_budget_bytes()
    vmem_limit = int(phys_vmem * 3 // 4)         # explicit, with headroom below physical

    auto_bn, auto_bc = _auto_tiles(N, C, itemsize, vmem_limit)
    if block_n is None:
        block_n = auto_bn
    if block_c is None:
        block_c = auto_bc
    assert block_c == C or block_c % 128 == 0, "block_c must equal C or be lane-aligned"

    nc = pl.cdiv(C, block_c)
    mask_cols = (nc * block_c != C)

    num_row_tiles = pl.cdiv(N, block_n)
    P = num_parallel if num_parallel is not None else _default_num_parallel(num_row_tiles)
    P = max(1, min(P, num_row_tiles))
    row_steps = pl.cdiv(num_row_tiles, P)

    last_tile = num_row_tiles - 1
    if P * row_steps == num_row_tiles:
        def row_idx(p, r):
            return p * row_steps + r
    else:
        # Clamp the (at most one) overhanging tile to the last real tile; the kernel's
        # row mask zeroes its contribution.
        def row_idx(p, r):
            return jnp.minimum(p * row_steps + r, last_tile)

    t2 = target.astype(jnp.int32).reshape(N, 1)
    kernel = functools.partial(
        _ls_ce_kernel, block_n=block_n, block_c=block_c, row_steps=row_steps,
        n_rows=N, n_classes=C, mask_cols=mask_cols)

    parts = pl.pallas_call(
        kernel,
        out_shape=jax.ShapeDtypeStruct((P, 8, 128), jnp.float32),
        grid_spec=pltpu.PrefetchScalarGridSpec(
            num_scalar_prefetch=0,
            grid=(P, row_steps, nc),
            in_specs=[
                pl.BlockSpec((block_n, block_c), lambda p, r, c: (row_idx(p, r), c)),
                pl.BlockSpec((block_n, 1), lambda p, r, c: (row_idx(p, r), 0)),
            ],
            out_specs=pl.BlockSpec((1, 8, 128), lambda p, r, c: (p, 0, 0)),
            scratch_shapes=[
                pltpu.VMEM((block_n, 1), jnp.float32),   # running max m
                pltpu.VMEM((block_n, 1), jnp.float32),   # running sum exp(x - m)
                pltpu.VMEM((block_n, 1), jnp.float32),   # running row sum
                pltpu.VMEM((block_n, 1), jnp.float32),   # running x[target]
                pltpu.VMEM((8, 128), jnp.float32),       # per-row-chunk partial sums
            ]),
        compiler_params=pltpu.CompilerParams(
            dimension_semantics=("parallel", "arbitrary", "arbitrary"),
            vmem_limit_bytes=vmem_limit),
    )(logits, t2)

    # Tiny epilogue in plain JAX: combine per-chunk partial sums.
    smooth_total = jnp.sum(parts[:, 0, 0])
    nll_total = jnp.sum(parts[:, 0, 1])
    denom = jnp.float32(N) if reduction == "mean" else jnp.float32(1.0)
    loss = smooth_total / denom
    nll = nll_total / denom
    return jnp.float32(eps) * (loss / jnp.float32(C)) + jnp.float32(1.0 - eps) * nll


def _reference(logits, target, eps=0.1, reduction="mean"):
    c = logits.shape[-1]
    log_preds = jax.nn.log_softmax(logits.astype(jnp.float32), axis=-1)
    loss = -log_preds.sum(axis=-1)
    nll = -jnp.take_along_axis(log_preds, target[:, None].astype(jnp.int32),
                               axis=-1)[:, 0]
    red = jnp.mean if reduction == "mean" else jnp.sum
    return eps * (red(loss) / c) + (1.0 - eps) * red(nll)


if __name__ == "__main__":
    key = jax.random.PRNGKey(0)
    k1, k2, k3, k4, k5, k6 = jax.random.split(key, 6)

    # Test 1: small even shapes, f32, mean reduction, auto sizing (single class chunk).
    N1, C1 = 16, 32
    logits1 = jax.random.normal(k1, (N1, C1), dtype=jnp.float32)
    target1 = jax.random.randint(k2, (N1,), 0, C1, dtype=jnp.int32)
    out1 = jax.block_until_ready(
        label_smoothing_cross_entropy(logits1, target1, eps=0.1, reduction="mean"))
    ref1 = _reference(logits1, target1, eps=0.1, reduction="mean")
    assert jnp.allclose(out1, ref1, rtol=1e-5, atol=1e-5), (out1, ref1)

    # Test 2: ragged N and ragged C, sum reduction, forced small tiles + 2 row chunks so
    # the chunked online-logsumexp path, column masking, row-tail masking and the clamped
    # duplicate tile are all exercised.
    N2, C2 = 37, 130
    logits2 = jax.random.normal(k3, (N2, C2), dtype=jnp.float32)
    target2 = jax.random.randint(k4, (N2,), 0, C2, dtype=jnp.int32)
    out2 = jax.block_until_ready(
        label_smoothing_cross_entropy(logits2, target2, eps=0.1, reduction="sum",
                                      block_n=16, block_c=128, num_parallel=2))
    ref2 = _reference(logits2, target2, eps=0.1, reduction="sum")
    assert jnp.allclose(out2, ref2, rtol=1e-5, atol=1e-3), (out2, ref2)

    # Test 3: bf16 logits (native bf16 max / x-m subtract path), mean reduction.
    N3, C3 = 24, 200
    logits3 = jax.random.normal(k5, (N3, C3), dtype=jnp.float32).astype(jnp.bfloat16)
    target3 = jax.random.randint(k6, (N3,), 0, C3, dtype=jnp.int32)
    out3 = jax.block_until_ready(
        label_smoothing_cross_entropy(logits3, target3, eps=0.1, reduction="mean"))
    ref3 = _reference(logits3.astype(jnp.float32), target3, eps=0.1, reduction="mean")
    assert jnp.allclose(out3, ref3, rtol=2e-2, atol=2e-2), (out3, ref3)

    print("KERNEL_OK")
</pallas_src>

<mosaic_0001>
module attributes {stable_mosaic.version = 11 : i64} {
  func.func @_ls_ce_kernel(%arg0: i32, %arg1: i32, %arg2: i32, %arg3: memref<16x32xf32, #tpu.memory_space<vmem>>, %arg4: memref<16x1xi32, #tpu.memory_space<vmem>>, %arg5: memref<1x8x128xf32, #tpu.memory_space<vmem>>, %arg6: memref<16x1xf32, #tpu.memory_space<vmem>>, %arg7: memref<16x1xf32, #tpu.memory_space<vmem>>, %arg8: memref<16x1xf32, #tpu.memory_space<vmem>>, %arg9: memref<16x1xf32, #tpu.memory_space<vmem>>, %arg10: memref<8x128xf32, #tpu.memory_space<vmem>>) attributes {dimension_semantics = [#tpu.dimension_semantics<parallel>, #tpu.dimension_semantics<arbitrary>, #tpu.dimension_semantics<arbitrary>], iteration_bounds = array<i64: 1, 1, 1>, scalar_prefetch = 0 : i64, scratch_operands = 5 : i64, tpu.core_type = #tpu.core_type<tc>, window_params = [{transform_indices = @transform_0, window_bounds = array<i64: 16, 32>}, {transform_indices = @transform_1, window_bounds = array<i64: 16, 1>}, {transform_indices = @transform_2, window_bounds = array<i64: 1, 8, 128>}]} {
    %c0_i32 = arith.constant 0 : i32
    %0 = arith.cmpi eq, %arg1, %c0_i32 : i32
    %c0_i32_0 = arith.constant 0 : i32
    %1 = arith.cmpi eq, %arg2, %c0_i32_0 : i32
    %2 = arith.andi %0, %1 : i1
    %3 = arith.extui %2 : i1 to i32
    %c0_i32_1 = arith.constant 0 : i32
    %4 = arith.cmpi ne, %3, %c0_i32_1 : i32
    scf.if %4 {
      %cst_32 = arith.constant 0.000000e+00 : f32
      %52 = vector.broadcast %cst_32 : f32 to vector<8x128xf32>
      %c0_33 = arith.constant 0 : index
      %c0_34 = arith.constant 0 : index
      %53 = vector.load %arg10[%c0_33, %c0_34] : memref<8x128xf32, #tpu.memory_space<vmem>>, vector<8x128xf32>
      tpu.vector_store %arg10[%c0_33, %c0_34], %52 {strides = array<i32>} : memref<8x128xf32, #tpu.memory_space<vmem>>, vector<8x128xf32>,
    } else {
    }
    %c0_i32_2 = arith.constant 0 : i32
    %5 = arith.cmpi eq, %arg2, %c0_i32_2 : i32
    %6 = arith.extui %5 : i1 to i32
    %c0_i32_3 = arith.constant 0 : i32
    %7 = arith.cmpi ne, %6, %c0_i32_3 : i32
    scf.if %7 {
      %cst_32 = arith.constant 0xFF800000 : f32
      %52 = vector.broadcast %cst_32 : f32 to vector<16x1xf32>
      %c0_33 = arith.constant 0 : index
      %c0_34 = arith.constant 0 : index
      %53 = vector.load %arg6[%c0_33, %c0_34] : memref<16x1xf32, #tpu.memory_space<vmem>>, vector<16x1xf32>
      tpu.vector_store %arg6[%c0_33, %c0_34], %52 {strides = array<i32>} : memref<16x1xf32, #tpu.memory_space<vmem>>, vector<16x1xf32>,
      %cst_35 = arith.constant 0.000000e+00 : f32
      %54 = vector.broadcast %cst_35 : f32 to vector<16x1xf32>
      %c0_36 = arith.constant 0 : index
      %c0_37 = arith.constant 0 : index
      %55 = vector.load %arg7[%c0_36, %c0_37] : memref<16x1xf32, #tpu.memory_space<vmem>>, vector<16x1xf32>
      tpu.vector_store %arg7[%c0_36, %c0_37], %54 {strides = array<i32>} : memref<16x1xf32, #tpu.memory_space<vmem>>, vector<16x1xf32>,
      %cst_38 = arith.constant 0.000000e+00 : f32
      %56 = vector.broadcast %cst_38 : f32 to vector<16x1xf32>
      %c0_39 = arith.constant 0 : index
      %c0_40 = arith.constant 0 : index
      %57 = vector.load %arg8[%c0_39, %c0_40] : memref<16x1xf32, #tpu.memory_space<vmem>>, vector<16x1xf32>
      tpu.vector_store %arg8[%c0_39, %c0_40], %56 {strides = array<i32>} : memref<16x1xf32, #tpu.memory_space<vmem>>, vector<16x1xf32>,
      %cst_41 = arith.constant 0.000000e+00 : f32
      %58 = vector.broadcast %cst_41 : f32 to vector<16x1xf32>
      %c0_42 = arith.constant 0 : index
      %c0_43 = arith.constant 0 : index
      %59 = vector.load %arg9[%c0_42, %c0_43] : memref<16x1xf32, #tpu.memory_space<vmem>>, vector<16x1xf32>
      tpu.vector_store %arg9[%c0_42, %c0_43], %58 {strides = array<i32>} : memref<16x1xf32, #tpu.memory_space<vmem>>, vector<16x1xf32>,
    } else {
    }
    %c0 = arith.constant 0 : index
    %c0_4 = arith.constant 0 : index
    %8 = vector.load %arg3[%c0, %c0_4] : memref<16x32xf32, #tpu.memory_space<vmem>>, vector<16x32xf32>
    %9 = tpu.iota {dimensions = array<i32: 1>} : vector<16x32xi32>
    %c32_i32 = arith.constant 32 : i32
    %10 = arith.muli %arg2, %c32_i32 : i32
    %11 = vector.broadcast %10 : i32 to vector<16x32xi32>
    %12 = arith.addi %9, %11 : vector<16x32xi32>
    %c0_5 = arith.constant 0 : index
    %c0_6 = arith.constant 0 : index
    %13 = vector.load %arg6[%c0_5, %c0_6] : memref<16x1xf32, #tpu.memory_space<vmem>>, vector<16x1xf32>
    %cst = arith.constant dense<0xFF800000> : vector<16xf32>
    %14 = vector.multi_reduction <maximumf>, %8, %cst [1] : vector<16x32xf32> to vector<16xf32>
    %15 = vector.shape_cast %14 : vector<16xf32> to vector<16x1xf32>
    %16 = arith.maximumf %13, %15 : vector<16x1xf32>
    %17 = arith.subf %13, %16 : vector<16x1xf32>
    %18 = math.exp %17 : vector<16x1xf32>
    %19 = vector.broadcast %16 : vector<16x1xf32> to vector<16x32xf32>
    %20 = arith.subf %8, %19 : vector<16x32xf32>
    %c0_7 = arith.constant 0 : index
    %c0_8 = arith.constant 0 : index
    %21 = vector.load %arg7[%c0_7, %c0_8] : memref<16x1xf32, #tpu.memory_space<vmem>>, vector<16x1xf32>
    %22 = arith.mulf %21, %18 : vector<16x1xf32>
    %23 = math.exp %20 : vector<16x32xf32>
    %cst_9 = arith.constant dense<0.000000e+00> : vector<16xf32>
    %24 = vector.multi_reduction <add>, %23, %cst_9 [1] : vector<16x32xf32> to vector<16xf32>
    %25 = vector.shape_cast %24 : vector<16xf32> to vector<16x1xf32>
    %26 = arith.addf %22, %25 : vector<16x1xf32>
    %c0_10 = arith.constant 0 : index
    %c0_11 = arith.constant 0 : index
    %27 = vector.load %arg7[%c0_10, %c0_11] : memref<16x1xf32, #tpu.memory_space<vmem>>, vector<16x1xf32>
    tpu.vector_store %arg7[%c0_10, %c0_11], %26 {strides = array<i32>} : memref<16x1xf32, #tpu.memory_space<vmem>>, vector<16x1xf32>,
    %c0_12 = arith.constant 0 : index
    %c0_13 = arith.constant 0 : index
    %28 = vector.load %arg6[%c0_12, %c0_13] : memref<16x1xf32, #tpu.memory_space<vmem>>, vector<16x1xf32>
    tpu.vector_store %arg6[%c0_12, %c0_13], %16 {strides = array<i32>} : memref<16x1xf32, #tpu.memory_space<vmem>>, vector<16x1xf32>,
    %c0_14 = arith.constant 0 : index
    %c0_15 = arith.constant 0 : index
    %29 = vector.load %arg8[%c0_14, %c0_15] : memref<16x1xf32, #tpu.memory_space<vmem>>, vector<16x1xf32>
    %cst_16 = arith.constant dense<0.000000e+00> : vector<16xf32>
    %30 = vector.multi_reduction <add>, %8, %cst_16 [1] : vector<16x32xf32> to vector<16xf32>
    %31 = vector.shape_cast %30 : vector<16xf32> to vector<16x1xf32>
    %32 = arith.addf %29, %31 : vector<16x1xf32>
    %c0_17 = arith.constant 0 : index
    %c0_18 = arith.constant 0 : index
    %33 = vector.load %arg8[%c0_17, %c0_18] : memref<16x1xf32, #tpu.memory_space<vmem>>, vector<16x1xf32>
    tpu.vector_store %arg8[%c0_17, %c0_18], %32 {strides = array<i32>} : memref<16x1xf32, #tpu.memory_space<vmem>>, vector<16x1xf32>,
    %c0_19 = arith.constant 0 : index
    %c0_20 = arith.constant 0 : index
    %34 = vector.load %arg4[%c0_19, %c0_20] : memref<16x1xi32, #tpu.memory_space<vmem>>, vector<16x1xi32>
    %c0_21 = arith.constant 0 : index
    %c0_22 = arith.constant 0 : index
    %35 = vector.load %arg9[%c0_21, %c0_22] : memref<16x1xf32, #tpu.memory_space<vmem>>, vector<16x1xf32>
    %36 = vector.broadcast %34 : vector<16x1xi32> to vector<16x32xi32>
    %37 = arith.cmpi eq, %12, %36 : vector<16x32xi32>
    %cst_23 = arith.constant 0.000000e+00 : f32
    %38 = vector.broadcast %cst_23 : f32 to vector<16x32xf32>
    %39 = arith.select %37, %8, %38 : vector<16x32xi1>, vector<16x32xf32>
    %cst_24 = arith.constant dense<0.000000e+00> : vector<16xf32>
    %40 = vector.multi_reduction <add>, %39, %cst_24 [1] : vector<16x32xf32> to vector<16xf32>
    %41 = vector.shape_cast %40 : vector<16xf32> to vector<16x1xf32>
    %42 = arith.addf %35, %41 : vector<16x1xf32>
    %c0_25 = arith.constant 0 : index
    %c0_26 = arith.constant 0 : index
    %43 = vector.load %arg9[%c0_25, %c0_26] : memref<16x1xf32, #tpu.memory_space<vmem>>, vector<16x1xf32>
    tpu.vector_store %arg9[%c0_25, %c0_26], %42 {strides = array<i32>} : memref<16x1xf32, #tpu.memory_space<vmem>>, vector<16x1xf32>,
    %c0_i32_27 = arith.constant 0 : i32
    %44 = arith.cmpi eq, %arg2, %c0_i32_27 : i32
    %45 = arith.extui %44 : i1 to i32
    %c0_i32_28 = arith.constant 0 : i32
    %46 = arith.cmpi ne, %45, %c0_i32_28 : i32
    scf.if %46 {
      %c1_i32 = arith.constant 1 : i32
      %52 = arith.muli %arg0, %c1_i32 : i32
      %53 = arith.addi %52, %arg1 : i32
      %c16_i32 = arith.constant 16 : i32
      %54 = arith.muli %53, %c16_i32 : i32
      %55 = tpu.iota {dimensions = array<i32: 0>} : vector<16x1xi32>
      %56 = vector.broadcast %54 : i32 to vector<16x1xi32>
      %57 = arith.addi %55, %56 : vector<16x1xi32>
      %c16_i32_32 = arith.constant 16 : i32
      %58 = vector.broadcast %c16_i32_32 : i32 to vector<16x1xi32>
      %59 = arith.cmpi slt, %57, %58 : vector<16x1xi32>
      %c0_33 = arith.constant 0 : index
      %c0_34 = arith.constant 0 : index
      %60 = vector.load %arg6[%c0_33, %c0_34] : memref<16x1xf32, #tpu.memory_space<vmem>>, vector<16x1xf32>
      %c0_35 = arith.constant 0 : index
      %c0_36 = arith.constant 0 : index
      %61 = vector.load %arg7[%c0_35, %c0_36] : memref<16x1xf32, #tpu.memory_space<vmem>>, vector<16x1xf32>
      %62 = math.log %61 : vector<16x1xf32>
      %63 = arith.addf %60, %62 : vector<16x1xf32>
      %cst_37 = arith.constant 3.200000e+01 : f32
      %64 = vector.broadcast %cst_37 : f32 to vector<16x1xf32>
      %65 = arith.mulf %64, %63 : vector<16x1xf32>
      %c0_38 = arith.constant 0 : index
      %c0_39 = arith.constant 0 : index
      %66 = vector.load %arg8[%c0_38, %c0_39] : memref<16x1xf32, #tpu.memory_space<vmem>>, vector<16x1xf32>
      %67 = arith.subf %65, %66 : vector<16x1xf32>
      %cst_40 = arith.constant 0.000000e+00 : f32
      %68 = vector.broadcast %cst_40 : f32 to vector<16x1xf32>
      %69 = arith.select %59, %67, %68 : vector<16x1xi1>, vector<16x1xf32>
      %c0_41 = arith.constant 0 : index
      %c0_42 = arith.constant 0 : index
      %70 = vector.load %arg9[%c0_41, %c0_42] : memref<16x1xf32, #tpu.memory_space<vmem>>, vector<16x1xf32>
      %71 = arith.subf %60, %70 : vector<16x1xf32>
      %72 = arith.addf %62, %71 : vector<16x1xf32>
      %cst_43 = arith.constant 0.000000e+00 : f32
      %73 = vector.broadcast %cst_43 : f32 to vector<16x1xf32>
      %74 = arith.select %59, %72, %73 : vector<16x1xi1>, vector<16x1xf32>
      %75 = tpu.iota {dimensions = array<i32: 0>} : vector<8x128xi32>
      %76 = tpu.iota {dimensions = array<i32: 1>} : vector<8x128xi32>
      %c0_44 = arith.constant 0 : index
      %c0_45 = arith.constant 0 : index
      %77 = vector.load %arg10[%c0_44, %c0_45] : memref<8x128xf32, #tpu.memory_space<vmem>>, vector<8x128xf32>
      %c0_i32_46 = arith.constant 0 : i32
      %78 = vector.broadcast %c0_i32_46 : i32 to vector<8x128xi32>
      %79 = arith.cmpi eq, %75, %78 : vector<8x128xi32>
      %c0_i32_47 = arith.constant 0 : i32
      %80 = vector.broadcast %c0_i32_47 : i32 to vector<8x128xi32>
      %81 = arith.cmpi eq, %76, %80 : vector<8x128xi32>
      %82 = arith.andi %79, %81 : vector<8x128xi1>
      %83 = vector.shape_cast %69 : vector<16x1xf32> to vector<1x16x1xf32>
      %cst_48 = arith.constant dense<0.000000e+00> : vector<1xf32>
      %84 = vector.multi_reduction <add>, %83, %cst_48 [1, 2] : vector<1x16x1xf32> to vector<1xf32>
      %85 = vector.shape_cast %84 : vector<1xf32> to vector<1x1x1xf32>
      %86 = vector.extract %85[0, 0, 0] : f32 from vector<1x1x1xf32>
      %cst_49 = arith.constant 0.000000e+00 : f32
      %87 = vector.broadcast %86 : f32 to vector<8x128xf32>
      %88 = vector.broadcast %cst_49 : f32 to vector<8x128xf32>
      %89 = arith.select %82, %87, %88 : vector<8x128xi1>, vector<8x128xf32>
      %90 = arith.addf %77, %89 : vector<8x128xf32>
      %c0_i32_50 = arith.constant 0 : i32
      %91 = vector.broadcast %c0_i32_50 : i32 to vector<8x128xi32>
      %92 = arith.cmpi eq, %75, %91 : vector<8x128xi32>
      %c1_i32_51 = arith.constant 1 : i32
      %93 = vector.broadcast %c1_i32_51 : i32 to vector<8x128xi32>
      %94 = arith.cmpi eq, %76, %93 : vector<8x128xi32>
      %95 = arith.andi %92, %94 : vector<8x128xi1>
      %96 = vector.shape_cast %74 : vector<16x1xf32> to vector<1x16x1xf32>
      %cst_52 = arith.constant dense<0.000000e+00> : vector<1xf32>
      %97 = vector.multi_reduction <add>, %96, %cst_52 [1, 2] : vector<1x16x1xf32> to vector<1xf32>
      %98 = vector.shape_cast %97 : vector<1xf32> to vector<1x1x1xf32>
      %99 = vector.extract %98[0, 0, 0] : f32 from vector<1x1x1xf32>
      %cst_53 = arith.constant 0.000000e+00 : f32
      %100 = vector.broadcast %99 : f32 to vector<8x128xf32>
      %101 = vector.broadcast %cst_53 : f32 to vector<8x128xf32>
      %102 = arith.select %95, %100, %101 : vector<8x128xi1>, vector<8x128xf32>
      %103 = arith.addf %90, %102 : vector<8x128xf32>
      %c0_54 = arith.constant 0 : index
      %c0_55 = arith.constant 0 : index
      %104 = vector.load %arg10[%c0_54, %c0_55] : memref<8x128xf32, #tpu.memory_space<vmem>>, vector<8x128xf32>
      tpu.vector_store %arg10[%c0_54, %c0_55], %103 {strides = array<i32>} : memref<8x128xf32, #tpu.memory_space<vmem>>, vector<8x128xf32>,
    } else {
    }
    %c0_i32_29 = arith.constant 0 : i32
    %47 = arith.cmpi eq, %arg1, %c0_i32_29 : i32
    %c0_i32_30 = arith.constant 0 : i32
    %48 = arith.cmpi eq, %arg2, %c0_i32_30 : i32
    %49 = arith.andi %47, %48 : i1
    %50 = arith.extui %49 : i1 to i32
    %c0_i32_31 = arith.constant 0 : i32
    %51 = arith.cmpi ne, %50, %c0_i32_31 : i32
    scf.if %51 {
      %c0_32 = arith.constant 0 : index
      %c0_33 = arith.constant 0 : index
      %52 = vector.load %arg10[%c0_32, %c0_33] : memref<8x128xf32, #tpu.memory_space<vmem>>, vector<8x128xf32>
      %53 = vector.shape_cast %52 : vector<8x128xf32> to vector<1x8x128xf32>
      %c0_34 = arith.constant 0 : index
      %c0_35 = arith.constant 0 : index
      %c0_36 = arith.constant 0 : index
      %54 = vector.load %arg5[%c0_34, %c0_35, %c0_36] : memref<1x8x128xf32, #tpu.memory_space<vmem>>, vector<1x8x128xf32>
      tpu.vector_store %arg5[%c0_34, %c0_35, %c0_36], %53 {strides = array<i32>} : memref<1x8x128xf32, #tpu.memory_space<vmem>>, vector<1x8x128xf32>,
    } else {
    }
    return
  }
  func.func @transform_0(%arg0: i32, %arg1: i32, %arg2: i32) -> (i32, i32) {
    %c1_i32 = arith.constant 1 : i32
    %0 = arith.muli %arg0, %c1_i32 : i32
    %1 = arith.addi %0, %arg1 : i32
    %c0_i32 = arith.constant 0 : i32
    return %1, %arg2 : i32, i32
  }
  func.func @transform_1(%arg0: i32, %arg1: i32, %arg2: i32) -> (i32, i32) {
    %c1_i32 = arith.constant 1 : i32
    %0 = arith.muli %arg0, %c1_i32 : i32
    %1 = arith.addi %0, %arg1 : i32
    %c0_i32 = arith.constant 0 : i32
    %c0_i32_0 = arith.constant 0 : i32
    return %1, %c0_i32 : i32, i32
  }
  func.func @transform_2(%arg0: i32, %arg1: i32, %arg2: i32) -> (i32, i32, i32) {
    %c0_i32 = arith.constant 0 : i32
    %c0_i32_0 = arith.constant 0 : i32
    %c0_i32_1 = arith.constant 0 : i32
    return %arg0, %c0_i32, %c0_i32_0 : i32, i32, i32
  }
}

</mosaic_0001>

<llo_original>
// kernel: tpu_custom_call.1
$region0: #{tpu_custom_call.1}
  #allocation0 [shape = 'u32[]', space=smem, size = 0x4, offset = 0x4, fixed_abs, tag = 'smem constant byte address 0x4 - core index']
  #allocation1 [shape = 'u32[144,128]{1,0:T(1,128)}', space=vmem, size = 0x12000, scoped, tag = 'internal scratch']
  #allocation2 [shape = 'f32[16,1]{1,0:T(8,128)}', space=vmem, size = 0x2000, scoped, tag = 'scratch operand']
  #allocation3 [shape = 'f32[16,1]{1,0:T(8,128)}', space=vmem, size = 0x2000, scoped, tag = 'scratch operand']
  #allocation4 [shape = 'f32[16,1]{1,0:T(8,128)}', space=vmem, size = 0x2000, scoped, tag = 'scratch operand']
  #allocation5 [shape = 'f32[16,1]{1,0:T(8,128)}', space=vmem, size = 0x2000, scoped, tag = 'scratch operand']
  #allocation6 [shape = 'f32[8,128]{1,0:T(8,128)}', space=vmem, size = 0x1000, scoped, tag = 'scratch operand']
  %s0 = inlined_call_operand.vmem [shape: f32[16,32], index: 0, kind: input, shape index: {}]
  %s1 = inlined_call_operand.vmem [shape: s32[16,1], index: 1, kind: input, shape index: {}]
  %s2 = inlined_call_operand.hbm [shape: f32[1,8,128], index: 2, kind: output, shape index: {}]
  %s3 = sld [smem:[#allocation0]]
  $region34: #{tpu_custom_call.1} parent=0
    _
  %s5 = ssub.s32 1, %s3
  %s6 = scalar_select 0, %s5, %s3
  $region1: #{tpu_custom_call.1} parent=0
    #allocation7 [shape = 'u8[4096]{0}', space=vmem, size = 0x1000, scoped, tag = 'output window, operand 0, single buffered']
    #allocation8 [shape = 's32[1]{0}', space=sflag, size = 0x4, scoped, tag = 'scoped memory for tpu_custom_call.1']
    %7 = vsyncpa [#allocation8], 0
    // Predicated region
    $region2: #{tpu_custom_call.1} parent=1 // pred_check
      _
    $region3: #{tpu_custom_call.1} parent=1 // pred_check_branch
      %9 = sbr.rel (0) target = $region5
    $region4: #{tpu_custom_call.1} parent=1 // pred_region
      %s10 = sadd.s32 0, 0
      %s11 = smul.u32 2, %s10
      %p12 = scmp.lt.s32.totalorder %s11, 1
      %s13 = scalar_select %p12, %s11, 1
      %s14 = smul.addr %s13, 8
      %s15 = scalar_lea.vmem %s0, %s14
      %s16 = sadd.s32 0, 0
      %s17 = smul.u32 2, %s16
    $region5: #{tpu_custom_call.1} parent=1 // pred_fallthru
      _
    // Predicated region
    $region6: #{tpu_custom_call.1} parent=1 // pred_check
      _
    $region7: #{tpu_custom_call.1} parent=1 // pred_check_branch
      %19 = sbr.rel (0) target = $region9
    $region8: #{tpu_custom_call.1} parent=1 // pred_region
      %s20 = sadd.s32 0, 0
      %s21 = smul.u32 2, %s20
      %p22 = scmp.lt.s32.totalorder %s21, 1
      %s23 = scalar_select %p22, %s21, 1
      %s24 = smul.addr %s23, 8
      %s25 = scalar_lea.vmem %s1, %s24
      %s26 = sadd.s32 0, 0
      %s27 = smul.u32 2, %s26
    $region9: #{tpu_custom_call.1} parent=1 // pred_fallthru
      _
    %s28 = sadd.s32 0, 0
    %s29 = smul.u32 2, %s28
    %p30 = scmp.lt.s32.totalorder %s29, 1
    %s31 = scalar_select %p30, %s29, 1
    %s32 = smul.addr %s31, 8
    %s33 = scalar_lea.vmem %s0, %s32
    %s34 = sadd.s32 0, 0
    %s35 = smul.u32 2, %s34
    %p36 = scmp.lt.s32.totalorder %s35, 1
    %s37 = scalar_select %p36, %s35, 1
    %s38 = smul.addr %s37, 8
    %s39 = scalar_lea.vmem %s1, %s38
    %s40 = sadd.s32 0, 0
    %s41 = smul.u32 2, %s40
    %p42 = scmp.lt.s32.totalorder %s41, 1
    %s43 = scalar_select %p42, %s41, 1
    %s44 = smul.addr %s43, 8
    %s45 = scalar_lea.vmem %s0, %s44
    %s46 = sadd.s32 0, 0
    %s47 = smul.u32 2, %s46
    %s48 = sadd.s32 0, 0
    %s49 = smul.u32 2, %s48
    %p50 = scmp.lt.s32.totalorder %s49, 1
    %s51 = scalar_select %p50, %s49, 1
    %s52 = smul.addr %s51, 8
    %s53 = scalar_lea.vmem %s1, %s52
    %s54 = sadd.s32 0, 0
    %s55 = smul.u32 2, %s54
    %p56 = scmp.eq.s32.totalorder 0, 0
    %p57 = scmp.eq.s32.totalorder 0, 0
    %p58 = pnand %p56, %p57
    %p59 = pneg %p58
    // Predicated region
    $region10: #{tpu_custom_call.1} parent=1 // pred_check
      _
    $region11: #{tpu_custom_call.1} parent=1 // pred_check_branch
      %61 = sbr.rel (%p58) target = $region13
    $region12: #{tpu_custom_call.1} parent=1 // pred_region
      %62 = vst [vmem:[#allocation6] sm:$0xff] 0.0
    $region13: #{tpu_custom_call.1} parent=1 // pred_fallthru
      _
    // Predicated region
    $region14: #{tpu_custom_call.1} parent=1 // pred_check
      %p63 = pneg %p57
    $region15: #{tpu_custom_call.1} parent=1 // pred_check_branch
      %65 = sbr.rel (%p63) target = $region17
    $region16: #{tpu_custom_call.1} parent=1 // pred_region
      %vm66 = vcmask 7168
      %67 = vst.msk [vmem:[#allocation2] sm:$0xff] %vm66, -inf
      %68 = vst.msk [vmem:[#allocation2 + $0x8] sm:$0xff] %vm66, -inf
      %69 = vst.msk [vmem:[#allocation3] sm:$0xff] %vm66, 0.0
      %70 = vst.msk [vmem:[#allocation3 + $0x8] sm:$0xff] %vm66, 0.0
      %71 = vst.msk [vmem:[#allocation4] sm:$0xff] %vm66, 0.0
      %72 = vst.msk [vmem:[#allocation4 + $0x8] sm:$0xff] %vm66, 0.0
      %73 = vst.msk [vmem:[#allocation5] sm:$0xff] %vm66, 0.0
      %74 = vst.msk [vmem:[#allocation5 + $0x8] sm:$0xff] %vm66, 0.0
    $region17: #{tpu_custom_call.1} parent=1 // pred_fallthru
      _
    %v75 = vld [vmem:[%s45] sm:$0xff]
    %v76 = vld [vmem:[%s45 + $0x8] sm:$0xff]
    %v77 = vlaneseq
    %v78 = vand.u32 %v77, 127
    %s79 = smul.u32 0, 32
    %v80 = vstv %s79
    %v81 = vadd.s32 %v78, %v80
    %v82 = vld [vmem:[#allocation2] sm:$0xff]
    %v83 = vld [vmem:[#allocation2 + $0x8] sm:$0xff]
    %vm84 = vcmask 261120
    %v85 = vsel %vm84, %v75, -inf
    %86 = vmax.xlane.f32.xlu0 %v85
    %v87 = vpop.xlane.xlu0 %86
    %v88 = vsel %vm84, %v76, -inf
    %89 = vmax.xlane.f32.xlu0 %v88
    %v90 = vpop.xlane.xlu0 %89
    %v91 = vmax.f32 %v82, %v87
    %v92 = vmax.f32 %v83, %v90
    %v93 = vsub.f32 %v82, %v91
    %v94 = vsub.f32 %v83, %v92
    %v95 = vmul.f32 %v93, 1.442695
    %v96 = vpow.pop %v95
    %v97 = vmul.f32 %v94, 1.442695
    %v98 = vpow.pop %v97
    %100 = vset.pattern.permute.xlu0 0
    %101 = vperm.xlu0 %100, %v91
    %v102 = vpop.permute.xlu0 %101
    %105 = vset.pattern.permute.xlu0 0
    %106 = vperm.xlu0 %105, %v92
    %v107 = vpop.permute.xlu0 %106
    %v109 = vsub.f32 %v75, %v102
    %v110 = vsub.f32 %v76, %v107
    %v111 = vld [vmem:[#allocation3] sm:$0xff]
    %v112 = vld [vmem:[#allocation3 + $0x8] sm:$0xff]
    %v113 = vmul.f32 %v111, %v96
    %v114 = vmul.f32 %v112, %v98
    %v115 = vmul.f32 %v109, 1.442695
    %v116 = vpow.pop %v115
    %v117 = vmul.f32 %v110, 1.442695
    %v118 = vpow.pop %v117
    %v119 = vsel %vm84, %v116, 0.0
    %120 = vadd.xlane.f32.xlu0 %v119
    %v121 = vpop.xlane.xlu0 %120
    %v122 = vsel %vm84, %v118, 0.0
    %123 = vadd.xlane.f32.xlu0 %v122
    %v124 = vpop.xlane.xlu0 %123
    %v125 = vadd.f32 %v113, %v121
    %v126 = vadd.f32 %v114, %v124
    %vm127 = vcmask 7168
    %128 = vst.msk [vmem:[#allocation3] sm:$0xff] %vm127, %v125
    %129 = vst.msk [vmem:[#allocation3 + $0x8] sm:$0xff] %vm127, %v126
    %130 = vst.msk [vmem:[#allocation2] sm:$0xff] %vm127, %v91
    %131 = vst.msk [vmem:[#allocation2 + $0x8] sm:$0xff] %vm127, %v92
    %v132 = vld [vmem:[#allocation4] sm:$0xff]
    %v133 = vld [vmem:[#allocation4 + $0x8] sm:$0xff]
    %v134 = vsel %vm84, %v75, 0.0
    %135 = vadd.xlane.f32.xlu0 %v134
    %v136 = vpop.xlane.xlu0 %135
    %v137 = vsel %vm84, %v76, 0.0
    %138 = vadd.xlane.f32.xlu0 %v137
    %v139 = vpop.xlane.xlu0 %138
    %v140 = vadd.f32 %v132, %v136
    %v141 = vadd.f32 %v133, %v139
    %142 = vst.msk [vmem:[#allocation4] sm:$0xff] %vm127, %v140
    %143 = vst.msk [vmem:[#allocation4 + $0x8] sm:$0xff] %vm127, %v141
    %v144 = vld [vmem:[%s53] sm:$0xff]
    %v145 = vld [vmem:[%s53 + $0x8] sm:$0xff]
    %v146 = vld [vmem:[#allocation5] sm:$0xff]
    %v147 = vld [vmem:[#allocation5 + $0x8] sm:$0xff]
    %148 = vset.pattern.permute.xlu0 0
    %149 = vperm.xlu0 %148, %v144
    %v150 = vpop.permute.xlu0 %149
    %151 = vset.pattern.permute.xlu0 0
    %152 = vperm.xlu0 %151, %v145
    %v153 = vpop.permute.xlu0 %152
    %vm154 = vcmp.eq.s32.totalorder %v81, %v150
    %vm155 = vcmp.eq.s32.totalorder %v81, %v153
    %v156 = vsel %vm154, %v75, 0.0
    %v157 = vsel %vm155, %v76, 0.0
    %v158 = vsel %vm84, %v156, 0.0
    %159 = vadd.xlane.f32.xlu0 %v158
    %v160 = vpop.xlane.xlu0 %159
    %v161 = vsel %vm84, %v157, 0.0
    %162 = vadd.xlane.f32.xlu0 %v161
    %v163 = vpop.xlane.xlu0 %162
    %v164 = vadd.f32 %v146, %v160
    %v165 = vadd.f32 %v147, %v163
    %166 = vst.msk [vmem:[#allocation5] sm:$0xff] %vm127, %v164
    %167 = vst.msk [vmem:[#allocation5 + $0x8] sm:$0xff] %vm127, %v165
    // Predicated region
    $region18: #{tpu_custom_call.1} parent=1 // pred_check
      %p168 = pneg %p57
    $region19: #{tpu_custom_call.1} parent=1 // pred_check_branch
      %170 = sbr.rel (%p168) target = $region21
    $region20: #{tpu_custom_call.1} parent=1 // pred_region
      %s171 = sadd.s32 0, 0
      %s172 = smul.u32 %s171, 16
      %v173 = vlaneseq
      %v174 = vshrl.u32 %v173, 7
      %v175 = vadd.s32 %v174, 8
      %v176 = vstv %s172
      %v177 = vadd.s32 %v174, %v176
      %v178 = vadd.s32 %v175, %v176
      %vm179 = vcmp.lt.s32.totalorder %v177, 16
      %vm180 = vcmp.lt.s32.totalorder %v178, 16
      %v181 = vld [vmem:[#allocation2] sm:$0xff]
      %v182 = vld [vmem:[#allocation2 + $0x8] sm:$0xff]
      %v183 = vld [vmem:[#allocation3] sm:$0xff]
      %v184 = vld [vmem:[#allocation3 + $0x8] sm:$0xff]
      %v185 = vlog2.pop %v183
      %v186 = vmul.f32 %v185, 0.6931472
      %v187 = vlog2.pop %v184
      %v188 = vmul.f32 %v187, 0.6931472
      %v189 = vadd.f32 %v181, %v186
      %v190 = vadd.f32 %v182, %v188
      %v191 = vmul.f32 %v189, 32.0
      %v192 = vmul.f32 %v190, 32.0
      %v193 = vld [vmem:[#allocation4] sm:$0xff]
      %v194 = vld [vmem:[#allocation4 + $0x8] sm:$0xff]
      %v195 = vsub.f32 %v191, %v193
      %v196 = vsub.f32 %v192, %v194
      %v197 = vsel %vm179, %v195, 0.0
      %v198 = vsel %vm180, %v196, 0.0
      %v199 = vld [vmem:[#allocation5] sm:$0xff]
      %v200 = vld [vmem:[#allocation5 + $0x8] sm:$0xff]
      %v201 = vsub.f32 %v181, %v199
      %v202 = vsub.f32 %v182, %v200
      %v203 = vadd.f32 %v186, %v201
      %v204 = vadd.f32 %v188, %v202
      %v205 = vsel %vm179, %v203, 0.0
      %v206 = vsel %vm180, %v204, 0.0
      %v207 = vld [vmem:[#allocation6] sm:$0xff]
      %vm208 = vcmp.eq.s32.totalorder %v174, 0
      %vm209 = vcmp.eq.s32.totalorder %v78, 0
      %vm210 = vmand %vm208, %vm209
      %v211 = vsel %vm127, %v197, 0.0
      %v212 = vsel %vm127, %v198, 0.0
      %v213 = vadd.f32 %v211, %v212
      %214 = vadd.xlane.f32.xlu0 %v213
      %v215 = vpop.xlane.xlu0 %214
      %v216 = vrot.slane %v215, 4
      %v217 = vadd.f32 %v215, %v216
      %v218 = vrot.slane %v217, 2
      %v219 = vadd.f32 %v217, %v218
      %v220 = vrot.slane %v219, 1
      %v221 = vadd.f32 %v219, %v220
      %s222 = vtos %v221
      %v223 = vstv %s222
      %v224 = vsel %vm210, %v223, 0.0
      %v225 = vadd.f32 %v207, %v224
      %vm226 = vcmp.eq.s32.totalorder %v78, 1
      %vm227 = vmand %vm208, %vm226
      %v228 = vsel %vm127, %v205, 0.0
      %v229 = vsel %vm127, %v206, 0.0
      %v230 = vadd.f32 %v228, %v229
      %231 = vadd.xlane.f32.xlu0 %v230
      %v232 = vpop.xlane.xlu0 %231
      %v233 = vrot.slane %v232, 4
      %v234 = vadd.f32 %v232, %v233
      %v235 = vrot.slane %v234, 2
      %v236 = vadd.f32 %v234, %v235
      %v237 = vrot.slane %v236, 1
      %v238 = vadd.f32 %v236, %v237
      %s239 = vtos %v238
      %v240 = vstv %s239
      %v241 = vsel %vm227, %v240, 0.0
      %v242 = vadd.f32 %v225, %v241
      %243 = vst [vmem:[#allocation6] sm:$0xff] %v242
    $region21: #{tpu_custom_call.1} parent=1 // pred_fallthru
      _
    // Predicated region
    $region22: #{tpu_custom_call.1} parent=1 // pred_check
      _
    $region23: #{tpu_custom_call.1} parent=1 // pred_check_branch
      %245 = sbr.rel (%p58) target = $region25
    $region24: #{tpu_custom_call.1} parent=1 // pred_region
      %v246 = vld [vmem:[#allocation6] sm:$0xff]
      %247 = vst [vmem:[#allocation7] sm:$0xff] %v246
    $region25: #{tpu_custom_call.1} parent=1 // pred_fallthru
      _
    // Predicated region
    $region26: #{tpu_custom_call.1} parent=1 // pred_check
      _
    $region27: #{tpu_custom_call.1} parent=1 // pred_check_branch
      %249 = sbr.rel (0) target = $region29
    $region28: #{tpu_custom_call.1} parent=1 // pred_region
      %s251 = ssub.s32 128, 128
      %252 = vsyncadd [#allocation8], %s251
      %s254 = sshll.u32 [#allocation7], 4
      %s255 = int_to_ptr.vmem [resolvable:$true] %s254
      %257 = dma.vmem_to_hbm [thread:$0]  %s255, 128, %s2, [#allocation8]
    $region29: #{tpu_custom_call.1} parent=1 // pred_fallthru
      _
    // Predicated region
    $region30: #{tpu_custom_call.1} parent=1 // pred_check
      _
    $region31: #{tpu_custom_call.1} parent=1 // pred_check_branch
      %259 = sbr.rel (0) target = $region33
    $region32: #{tpu_custom_call.1} parent=1 // pred_region
      %260 = dma.done [#allocation8], 128
    $region33: #{tpu_custom_call.1} parent=1 // pred_fallthru
      _
    %261 = vsyncpa [#allocation8], 1

</llo_original>
